<compile_context>
chip_gen: v7x
topology: tpu7x:2x2x1
jax: 0.10.0
libtpu: 0.0.40
codegen_flags: <defaults>
</compile_context>

<pallas_src>
from functools import partial

import jax
import jax.numpy as jnp
from jax.experimental import pallas as pl
from jax.experimental.pallas import tpu as pltpu

_LANE = 128


def _round_up(x, m):
    return ((x + m - 1) // m) * m


def _dice_stats_kernel(p_ref, lbl_ref, out_ref, *, n_classes, hw, t_hw,
                       tiles_per_chunk, apply_softmax, need_valid):
    """Accumulate per-class (intersect, pred^2-sum, target^2-sum) into out_ref.

    p_ref:   (C, T_HW)  predictions for one batch element / one HW tile
    lbl_ref: (1, T_HW)  integer class ids
    out_ref: (C, 3)     float32 running statistics for this (batch, chunk)
    """
    t = pl.program_id(2)

    @pl.when(t == 0)
    def _():
        out_ref[...] = jnp.zeros_like(out_ref)

    p = p_ref[...].astype(jnp.float32)                  # (C, T_HW)
    labels = lbl_ref[...].astype(jnp.int32)             # (1, T_HW)

    if apply_softmax:
        # softmax over the class (sublane) axis, matching torch.softmax(dim=1)
        m = jnp.max(p, axis=0, keepdims=True)           # (1, T_HW)
        e = jnp.exp(p - m)                               # EUP
        denom = jnp.sum(e, axis=0, keepdims=True)        # (1, T_HW)
        inv = pl.reciprocal(denom, approx=True)          # EUP approx reciprocal
        inv = inv * (2.0 - denom * inv)                  # Newton step -> ~f32
        p = e * inv

    # Per-class one-hot mask built in-register from the integer labels
    # (no materialized one-hot tensor in HBM).
    class_ids = jax.lax.broadcasted_iota(jnp.int32, (n_classes, 1), 0)  # (C,1)
    onehot = labels == class_ids                          # (C, T_HW) bool

    if need_valid:
        # Mask lanes past the real HW extent of this tile.  Covers both the
        # ragged last tile (partial DMA -> stale/NaN garbage in the tail) and
        # fully-overshooting clamped tiles of the last chunk (rem <= 0).
        # jnp.where (select) is used instead of multiply-by-zero so NaN/inf
        # garbage cannot propagate into the sums.
        gt = pl.program_id(1) * tiles_per_chunk + t       # global tile index
        rem = hw - gt * t_hw                              # valid lanes left
        lane = jax.lax.broadcasted_iota(jnp.int32, (1, t_hw), 1)
        valid = lane < rem
        p = jnp.where(valid, p, 0.0)
        onehot = jnp.logical_and(onehot, valid)

    ohf = onehot.astype(jnp.float32)                      # reused for inter & ysum
    inter = jnp.sum(p * ohf, axis=1, keepdims=True)       # (C, 1)
    psum = jnp.sum(p * p, axis=1, keepdims=True)          # (C, 1)
    ysum = jnp.sum(ohf, axis=1, keepdims=True)            # (C, 1)

    # Single (C, 3) accumulator update (one masked store instead of three
    # width-1 lane-slice RMWs).  Built with selects (pure VPU, no lane concat).
    lane3 = jax.lax.broadcasted_iota(jnp.int32, (n_classes, 3), 1)
    upd = jnp.where(lane3 == 0, inter, jnp.where(lane3 == 1, psum, ysum))
    out_ref[...] += upd


def dice_loss(preds, target_labels, weight=None, softmax=True, smooth=1e-5,
              max_tile_lanes=128 * 1024):
    """preds: (N, C, H, W) float (f32 or bf16); target_labels: (N, H, W) ints
    with class ids in [0, C).  Mirrors DiceLoss.forward with args.n_labels == C.

    # one_hot_1 (undefined in the reference file) is assumed to one-hot the
    # integer label map along the channel axis; here the one-hot is never
    # materialized — the kernel builds the mask from the labels directly.
    """
    N, C, H, W = preds.shape
    HW = H * W

    p = preds.reshape(N, C, HW)                      # keep dtype; cast in-kernel
    labels = target_labels.reshape(N, 1, HW)
    if labels.dtype not in (jnp.int8, jnp.uint8, jnp.int32):
        labels = labels.astype(jnp.int32)            # e.g. int64/int16 -> int32

    # ---- generation-aware VMEM budget & lane-dense HW tile sizing ----------
    try:
        info = pltpu.get_tpu_info()
        vmem_cap = int(getattr(info, "vmem_capacity_bytes", 64 * 1024 * 1024))
    except Exception:  # pragma: no cover - conservative fallback (v7x-safe)
        vmem_cap = 64 * 1024 * 1024
    # v7x (64 MiB physical) -> 48 MiB limit; v5e/v6e (128 MiB) -> 96 MiB limit.
    vmem_limit = max(16 * 1024 * 1024,
                     min(vmem_cap * 3 // 4, 96 * 1024 * 1024))
    buf_budget = (vmem_limit * 85) // 100            # headroom for scratch/regs

    # VMEM footprint per HW lane, double-buffered:
    #   preds block (C, t_hw): ceil(C*itemsize/32)*32 bytes per lane
    #   label block (1, t_hw): one 8-sublane (packed) slab = 32 bytes per lane
    pred_lane_bytes = 32 * ((C * p.dtype.itemsize + 31) // 32)
    bytes_per_lane = 2 * (pred_lane_bytes + 32)
    t_hw = (buf_budget // bytes_per_lane) // _LANE * _LANE
    t_hw = max(_LANE, min(t_hw, max_tile_lanes, _round_up(HW, _LANE)))

    hw_tiles = -(-HW // t_hw)

    # Extra "parallel" HW-chunk axis so a single-image batch still feeds both
    # v7x TensorCores (no effect on single-TC v5e/v6e).
    n_chunks = 1 if N >= 2 else min(2, hw_tiles)
    tpc = -(-hw_tiles // n_chunks)                   # tiles per chunk

    exact_cover = (n_chunks * tpc == hw_tiles)
    need_valid = (HW % t_hw != 0) or (not exact_cover)

    if exact_cover:
        def hw_block(c, t):
            return c * tpc + t
    else:
        # Clamp overshooting tiles of the last chunk onto the last real tile
        # (keeps the DMA in bounds); the kernel's lane mask zeroes them out.
        def hw_block(c, t):
            return jnp.minimum(c * tpc + t, hw_tiles - 1)

    kernel = partial(_dice_stats_kernel, n_classes=C, hw=HW, t_hw=t_hw,
                     tiles_per_chunk=tpc, apply_softmax=softmax,
                     need_valid=need_valid)

    stats = pl.pallas_call(
        kernel,
        out_shape=jax.ShapeDtypeStruct((N, n_chunks, C, 3), jnp.float32),
        grid_spec=pltpu.PrefetchScalarGridSpec(
            num_scalar_prefetch=0,
            grid=(N, n_chunks, tpc),
            in_specs=[
                pl.BlockSpec((pl.Squeezed(), C, t_hw),
                             lambda n, c, t: (n, 0, hw_block(c, t))),
                pl.BlockSpec((pl.Squeezed(), 1, t_hw),
                             lambda n, c, t: (n, 0, hw_block(c, t))),
            ],
            out_specs=pl.BlockSpec((pl.Squeezed(), pl.Squeezed(), C, 3),
                                   lambda n, c, t: (n, c, 0, 0)),
        ),
        compiler_params=pltpu.CompilerParams(
            dimension_semantics=("parallel", "parallel", "arbitrary"),
            vmem_limit_bytes=int(vmem_limit),
        ),
    )(p, labels)

    # tiny final combine in plain JAX (keeps batch & chunk grid axes parallel).
    totals = jnp.sum(stats, axis=(0, 1))             # (C, 3)
    inter, psum, ysum = totals[:, 0], totals[:, 1], totals[:, 2]
    # NB: matches the PyTorch reference — `smooth` only in the numerator; the
    # non-softmax path can still divide by zero for an all-empty class.
    dice = (2.0 * inter + smooth) / (psum + ysum)
    if weight is None:
        w = jnp.ones((C,), jnp.float32)
    else:
        w = jnp.asarray(weight, jnp.float32).reshape(C)
    return jnp.sum((1.0 - dice) * w) / C


def _reference_dice_loss(preds, target_labels, weight=None):
    N, C, H, W = preds.shape
    p = jax.nn.softmax(preds.astype(jnp.float32), axis=1)
    t = jax.nn.one_hot(target_labels, C, axis=1, dtype=jnp.float32)
    smooth = 1e-5
    total = 0.0
    for i in range(C):
        inter = jnp.sum(p[:, i] * t[:, i])
        psum = jnp.sum(p[:, i] * p[:, i])
        ysum = jnp.sum(t[:, i] * t[:, i])
        dice = (2.0 * inter + smooth) / (psum + ysum)
        wi = 1.0 if weight is None else weight[i]
        total = total + (1.0 - dice) * wi
    return total / C


if __name__ == "__main__":
    key = jax.random.PRNGKey(0)
    N, C, H, W = 2, 4, 16, 16
    k1, k2 = jax.random.split(key)
    preds = jax.random.normal(k1, (N, C, H, W), dtype=jnp.float32)
    target = jax.random.randint(k2, (N, H, W), 0, C)

    loss = jax.block_until_ready(dice_loss(preds, target))
    ref = jax.block_until_ready(_reference_dice_loss(preds, target))
    assert jnp.allclose(loss, ref, atol=1e-4, rtol=1e-4), (loss, ref)

    # bf16 logits path: halves the dominant HBM stream, f32 accumulation.
    loss_bf16 = jax.block_until_ready(dice_loss(preds.astype(jnp.bfloat16), target))
    assert jnp.allclose(loss_bf16, ref, atol=5e-2), (loss_bf16, ref)

    # ragged HW (15*15 = 225 is not a multiple of the 128-lane tile):
    # exercises the in-kernel tail masking (no wrapper-side padding of preds).
    preds_r = jax.random.normal(k1, (1, C, 15, 15), dtype=jnp.float32)
    target_r = jax.random.randint(k2, (1, 15, 15), 0, C)
    loss_r = jax.block_until_ready(dice_loss(preds_r, target_r))
    ref_r = jax.block_until_ready(_reference_dice_loss(preds_r, target_r))
    assert jnp.allclose(loss_r, ref_r, atol=1e-4, rtol=1e-4), (loss_r, ref_r)

    # force tiny tiles to exercise the chunked (dual-TensorCore) grid with a
    # clamped overshoot tile (N=1, 3 HW tiles split over 2 chunks of 2).
    preds_c = jax.random.normal(k1, (1, C, 16, 24), dtype=jnp.float32)
    target_c = jax.random.randint(k2, (1, 16, 24), 0, C)
    loss_c = jax.block_until_ready(dice_loss(preds_c, target_c, max_tile_lanes=128))
    ref_c = jax.block_until_ready(_reference_dice_loss(preds_c, target_c))
    assert jnp.allclose(loss_c, ref_c, atol=1e-4, rtol=1e-4), (loss_c, ref_c)

    print("KERNEL_OK")
</pallas_src>

<mosaic_0001>
module attributes {stable_mosaic.version = 11 : i64} {
  func.func @_dice_stats_kernel(%arg0: i32, %arg1: i32, %arg2: i32, %arg3: memref<1x4x256xf32, #tpu.memory_space<vmem>>, %arg4: memref<1x1x256xi32, #tpu.memory_space<vmem>>, %arg5: memref<1x1x4x3xf32, #tpu.memory_space<vmem>>) attributes {dimension_semantics = [#tpu.dimension_semantics<parallel>, #tpu.dimension_semantics<parallel>, #tpu.dimension_semantics<arbitrary>], iteration_bounds = array<i64: 2, 1, 1>, scalar_prefetch = 0 : i64, scratch_operands = 0 : i64, tpu.core_type = #tpu.core_type<tc>, window_params = [{transform_indices = @transform_0, window_bounds = array<i64: 1, 4, 256>}, {transform_indices = @transform_1, window_bounds = array<i64: 1, 1, 256>}, {transform_indices = @transform_2, window_bounds = array<i64: 1, 1, 4, 3>}]} {
    %c0_i32 = arith.constant 0 : i32
    %0 = arith.cmpi eq, %arg2, %c0_i32 : i32
    %1 = arith.extui %0 : i1 to i32
    %c0_i32_0 = arith.constant 0 : i32
    %2 = arith.cmpi ne, %1, %c0_i32_0 : i32
    scf.if %2 {
      %cst_20 = arith.constant 0.000000e+00 : f32
      %54 = vector.broadcast %cst_20 : f32 to vector<4x3xf32>
      %c0_21 = arith.constant 0 : index
      %c0_22 = arith.constant 0 : index
      %c0_23 = arith.constant 0 : index
      %c0_24 = arith.constant 0 : index
      %55 = vector.load %arg5[%c0_21, %c0_22, %c0_23, %c0_24] : memref<1x1x4x3xf32, #tpu.memory_space<vmem>>, vector<1x1x4x3xf32>
      %56 = vector.shape_cast %55 : vector<1x1x4x3xf32> to vector<4x3xf32>
      %57 = vector.shape_cast %54 : vector<4x3xf32> to vector<1x1x4x3xf32>
      tpu.vector_store %arg5[%c0_21, %c0_22, %c0_23, %c0_24], %57 {strides = array<i32>} : memref<1x1x4x3xf32, #tpu.memory_space<vmem>>, vector<1x1x4x3xf32>,
    } else {
    }
    %c0 = arith.constant 0 : index
    %c0_1 = arith.constant 0 : index
    %c0_2 = arith.constant 0 : index
    %3 = vector.load %arg3[%c0, %c0_1, %c0_2] : memref<1x4x256xf32, #tpu.memory_space<vmem>>, vector<1x4x256xf32>
    %4 = vector.shape_cast %3 : vector<1x4x256xf32> to vector<4x256xf32>
    %c0_3 = arith.constant 0 : index
    %c0_4 = arith.constant 0 : index
    %c0_5 = arith.constant 0 : index
    %5 = vector.load %arg4[%c0_3, %c0_4, %c0_5] : memref<1x1x256xi32, #tpu.memory_space<vmem>>, vector<1x1x256xi32>
    %6 = vector.shape_cast %5 : vector<1x1x256xi32> to vector<1x256xi32>
    %cst = arith.constant dense<0xFF800000> : vector<256xf32>
    %7 = vector.multi_reduction <maximumf>, %4, %cst [0] : vector<4x256xf32> to vector<256xf32>
    %8 = vector.shape_cast %7 : vector<256xf32> to vector<1x256xf32>
    %9 = vector.broadcast %8 : vector<1x256xf32> to vector<4x256xf32>
    %10 = arith.subf %4, %9 : vector<4x256xf32>
    %11 = math.exp %10 : vector<4x256xf32>
    %cst_6 = arith.constant dense<0.000000e+00> : vector<256xf32>
    %12 = vector.multi_reduction <add>, %11, %cst_6 [0] : vector<4x256xf32> to vector<256xf32>
    %13 = vector.shape_cast %12 : vector<256xf32> to vector<1x256xf32>
    %14 = tpu.reciprocal %13 {approx = true} : vector<1x256xf32> -> vector<1x256xf32>
    %15 = arith.mulf %13, %14 : vector<1x256xf32>
    %cst_7 = arith.constant 2.000000e+00 : f32
    %16 = vector.broadcast %cst_7 : f32 to vector<1x256xf32>
    %17 = arith.subf %16, %15 : vector<1x256xf32>
    %18 = arith.mulf %14, %17 : vector<1x256xf32>
    %19 = vector.broadcast %18 : vector<1x256xf32> to vector<4x256xf32>
    %20 = arith.mulf %11, %19 : vector<4x256xf32>
    %21 = tpu.iota {dimensions = array<i32: 0>} : vector<4x1xi32>
    %22 = vector.broadcast %6 : vector<1x256xi32> to vector<4x256xi32>
    %23 = vector.broadcast %21 : vector<4x1xi32> to vector<4x256xi32>
    %24 = arith.cmpi eq, %22, %23 : vector<4x256xi32>
    %25 = arith.extui %24 : vector<4x256xi1> to vector<4x256xi32>
    %26 = arith.sitofp %25 : vector<4x256xi32> to vector<4x256xf32>
    %27 = arith.mulf %20, %26 : vector<4x256xf32>
    %cst_8 = arith.constant dense<0.000000e+00> : vector<4xf32>
    %28 = vector.multi_reduction <add>, %27, %cst_8 [1] : vector<4x256xf32> to vector<4xf32>
    %29 = vector.shape_cast %28 : vector<4xf32> to vector<4x1xf32>
    %30 = arith.mulf %20, %20 : vector<4x256xf32>
    %cst_9 = arith.constant dense<0.000000e+00> : vector<4xf32>
    %31 = vector.multi_reduction <add>, %30, %cst_9 [1] : vector<4x256xf32> to vector<4xf32>
    %32 = vector.shape_cast %31 : vector<4xf32> to vector<4x1xf32>
    %cst_10 = arith.constant dense<0.000000e+00> : vector<4xf32>
    %33 = vector.multi_reduction <add>, %26, %cst_10 [1] : vector<4x256xf32> to vector<4xf32>
    %34 = vector.shape_cast %33 : vector<4xf32> to vector<4x1xf32>
    %35 = tpu.iota {dimensions = array<i32: 1>} : vector<4x3xi32>
    %c0_i32_11 = arith.constant 0 : i32
    %36 = vector.broadcast %c0_i32_11 : i32 to vector<4x3xi32>
    %37 = arith.cmpi eq, %35, %36 : vector<4x3xi32>
    %c1_i32 = arith.constant 1 : i32
    %38 = vector.broadcast %c1_i32 : i32 to vector<4x3xi32>
    %39 = arith.cmpi eq, %35, %38 : vector<4x3xi32>
    %40 = vector.shape_cast %32 : vector<4x1xf32> to vector<4x1xf32>
    %41 = vector.broadcast %40 : vector<4x1xf32> to vector<4x3xf32>
    %42 = vector.shape_cast %34 : vector<4x1xf32> to vector<4x1xf32>
    %43 = vector.broadcast %42 : vector<4x1xf32> to vector<4x3xf32>
    %44 = arith.select %39, %41, %43 : vector<4x3xi1>, vector<4x3xf32>
    %45 = vector.shape_cast %29 : vector<4x1xf32> to vector<4x1xf32>
    %46 = vector.broadcast %45 : vector<4x1xf32> to vector<4x3xf32>
    %47 = arith.select %37, %46, %44 : vector<4x3xi1>, vector<4x3xf32>
    %c0_12 = arith.constant 0 : index
    %c0_13 = arith.constant 0 : index
    %c0_14 = arith.constant 0 : index
    %c0_15 = arith.constant 0 : index
    %48 = vector.load %arg5[%c0_12, %c0_13, %c0_14, %c0_15] : memref<1x1x4x3xf32, #tpu.memory_space<vmem>>, vector<1x1x4x3xf32>
    %49 = vector.shape_cast %48 : vector<1x1x4x3xf32> to vector<4x3xf32>
    %50 = arith.addf %49, %47 : vector<4x3xf32>
    %c0_16 = arith.constant 0 : index
    %c0_17 = arith.constant 0 : index
    %c0_18 = arith.constant 0 : index
    %c0_19 = arith.constant 0 : index
    %51 = vector.load %arg5[%c0_16, %c0_17, %c0_18, %c0_19] : memref<1x1x4x3xf32, #tpu.memory_space<vmem>>, vector<1x1x4x3xf32>
    %52 = vector.shape_cast %51 : vector<1x1x4x3xf32> to vector<4x3xf32>
    %53 = vector.shape_cast %50 : vector<4x3xf32> to vector<1x1x4x3xf32>
    tpu.vector_store %arg5[%c0_16, %c0_17, %c0_18, %c0_19], %53 {strides = array<i32>} : memref<1x1x4x3xf32, #tpu.memory_space<vmem>>, vector<1x1x4x3xf32>,
    return
  }
  func.func @transform_0(%arg0: i32, %arg1: i32, %arg2: i32) -> (i32, i32, i32) {
    %c1_i32 = arith.constant 1 : i32
    %0 = arith.muli %arg1, %c1_i32 : i32
    %1 = arith.addi %0, %arg2 : i32
    %c0_i32 = arith.constant 0 : i32
    %c0_i32_0 = arith.constant 0 : i32
    return %arg0, %c0_i32, %1 : i32, i32, i32
  }
  func.func @transform_1(%arg0: i32, %arg1: i32, %arg2: i32) -> (i32, i32, i32) {
    %c1_i32 = arith.constant 1 : i32
    %0 = arith.muli %arg1, %c1_i32 : i32
    %1 = arith.addi %0, %arg2 : i32
    %c0_i32 = arith.constant 0 : i32
    %c0_i32_0 = arith.constant 0 : i32
    return %arg0, %c0_i32, %1 : i32, i32, i32
  }
  func.func @transform_2(%arg0: i32, %arg1: i32, %arg2: i32) -> (i32, i32, i32, i32) {
    %c0_i32 = arith.constant 0 : i32
    %c0_i32_0 = arith.constant 0 : i32
    %c0_i32_1 = arith.constant 0 : i32
    return %arg0, %arg1, %c0_i32, %c0_i32_0 : i32, i32, i32, i32
  }
}

</mosaic_0001>

<llo_original>
// kernel: tpu_custom_call.1
$region0: #{tpu_custom_call.1}
  #allocation0 [shape = 'u32[]', space=smem, size = 0x4, offset = 0x4, fixed_abs, tag = 'smem constant byte address 0x4 - core index']
  #allocation1 [shape = 'u32[144,128]{1,0:T(1,128)}', space=vmem, size = 0x12000, scoped, tag = 'internal scratch']
  %s0 = inlined_call_operand.hbm [shape: f32[2,4,256], index: 0, kind: input, shape index: {}]
  %s1 = inlined_call_operand.hbm [shape: s32[2,1,256], index: 1, kind: input, shape index: {}]
  %s2 = inlined_call_operand.vmem [shape: f32[2,1,4,3], index: 2, kind: output, shape index: {}]
  %s3 = sld [smem:[#allocation0]]
  $region53: #{tpu_custom_call.1} parent=0
    _
  %s5 = ssub.s32 1, %s3
  %s6 = scalar_select 0, %s5, %s3
  $region1: #{tpu_custom_call.1} parent=0
    #allocation2 [shape = 'u8[8192]{0}', space=vmem, size = 0x2000, scoped, tag = 'input window, operand 0']
    #allocation3 [shape = 's32[2]{0}', space=sflag, size = 0x8, scoped, tag = 'scoped memory for tpu_custom_call.1']
    #allocation4 [shape = 'u8[2048]{0}', space=vmem, size = 0x800, scoped, tag = 'input window, operand 1']
    #allocation5 [shape = 's32[2]{0}', space=sflag, size = 0x8, scoped, tag = 'scoped memory for tpu_custom_call.1']
    %7 = vsyncpa [#allocation3], 0
    %s8 = scalar_lea.sflag [#allocation3], 1
    %9 = vsyncpa %s8, 0
    %10 = vsyncpa [#allocation5], 0
    %s11 = scalar_lea.sflag [#allocation5], 1
    %12 = vsyncpa %s11, 0
    loop: start=0, step=1, limit=4
    $region2: #{tpu_custom_call.1} parent=1 // loop_pre_header
      _
    $region3: #{tpu_custom_call.1} parent=1 // loop_header
      %s14 = sphi 0, %s18
      %p15 = scmp.ge.s32.totalorder %s14, 4
      %s21 = sphi 0, %s40
      %s22 = sphi 0, %s36
      %s23 = sphi 0, %s32
      %s24 = sphi 0, %s21
      %s25 = sphi 0, %s22
      %s26 = sphi 0, %s23
      %s27 = sphi 0, %s24
      %s28 = sphi 0, %s25
      %s29 = sphi 0, %s26
      %s47 = sphi 0, %s49
      %s50 = sphi 0, %s47
      %s51 = sphi 0, %s50
      %s67 = sphi 0, %s51
      %s77 = sphi 0, %s79
      %s80 = sphi 0, %s77
      %s81 = sphi 0, %s80
      %s97 = sphi 0, %s81
      %s105 = sphi 0, %s107
      %s108 = sphi 0, %s105
      %s109 = sphi 0, %s108
      %s125 = sphi 0, %s109
    $region4: #{tpu_custom_call.1} parent=1 // loop_header_branch
      %17 = sbr.rel (%p15) target = $region8
    $region5: #{tpu_custom_call.1} parent=1 // loop_body
      %s19 = ssub.s32 %s14, 1
      %s20 = ssub.s32 %s14, 2
      %s30 = sadd.s32 1, %s23
      %p31 = scmp.ge.s32.totalorder %s30, 1
      %s32 = scalar_select %p31, 0, %s30
      %s33 = sadd.s32 1, %s22
      %s34 = scalar_select %p31, %s33, %s22
      %p35 = scmp.ge.s32.totalorder %s34, 1
      %s36 = scalar_select %p35, 0, %s34
      %s37 = sadd.s32 1, %s21
      %s38 = scalar_select %p35, %s37, %s21
      %p39 = scmp.ge.s32.totalorder %s38, 2
      %s40 = scalar_select %p39, 0, %s38
      %s41 = sadd.s32 %s22, %s23
      %s42 = sadd.s32 %s36, %s32
      %s43 = ssub.s32 %s21, %s40
      %s44 = ssub.s32 %s41, %s42
      %s45 = sor.u32 %s43, %s44
      %p46 = scmp.eq.s32.totalorder %s45, 0
      %s48 = sadd.s32 %s47, 1
      %s49 = scalar_select %p46, %s47, %s48
      %p52 = pneg %p46
      %p53 = scmp.eq.s32.totalorder %s14, 1
      %p54 = por %p52, %p53
      %p55 = scmp.ne.s32.totalorder %s47, %s50
      %p56 = scmp.eq.s32.totalorder %s14, 0
      %p57 = por %p55, %p56
      %p58 = scmp.ne.s32.totalorder %s47, %s50
      %p59 = scmp.eq.s32.totalorder %s19, 1
      %p60 = por %p58, %p59
      %p61 = scmp.ne.s32.totalorder %s50, %s51
      %p62 = scmp.eq.s32.totalorder %s19, 0
      %p63 = por %p61, %p62
      %p64 = scmp.ne.s32.totalorder %s50, %s51
      %p65 = scmp.eq.s32.totalorder %s20, 1
      %p66 = por %p64, %p65
      %p68 = scmp.ne.s32.totalorder %s51, %s67
      %p69 = scmp.eq.s32.totalorder %s20, 0
      %p70 = por %p68, %p69
      %s71 = sadd.s32 %s22, %s23
      %s72 = sadd.s32 %s36, %s32
      %s73 = ssub.s32 %s21, %s40
      %s74 = ssub.s32 %s71, %s72
      %s75 = sor.u32 %s73, %s74
      %p76 = scmp.eq.s32.totalorder %s75, 0
      %s78 = sadd.s32 %s77, 1
      %s79 = scalar_select %p76, %s77, %s78
      %p82 = pneg %p76
      %p83 = scmp.eq.s32.totalorder %s14, 1
      %p84 = por %p82, %p83
      %p85 = scmp.ne.s32.totalorder %s77, %s80
      %p86 = scmp.eq.s32.totalorder %s14, 0
      %p87 = por %p85, %p86
      %p88 = scmp.ne.s32.totalorder %s77, %s80
      %p89 = scmp.eq.s32.totalorder %s19, 1
      %p90 = por %p88, %p89
      %p91 = scmp.ne.s32.totalorder %s80, %s81
      %p92 = scmp.eq.s32.totalorder %s19, 0
      %p93 = por %p91, %p92
      %p94 = scmp.ne.s32.totalorder %s80, %s81
      %p95 = scmp.eq.s32.totalorder %s20, 1
      %p96 = por %p94, %p95
      %p98 = scmp.ne.s32.totalorder %s81, %s97
      %p99 = scmp.eq.s32.totalorder %s20, 0
      %p100 = por %p98, %p99
      %s101 = ssub.s32 %s21, %s40
      %s102 = ssub.s32 %s22, %s36
      %s103 = sor.u32 %s101, %s102
      %p104 = scmp.eq.s32.totalorder %s103, 0
      %s106 = sadd.s32 %s105, 1
      %s107 = scalar_select %p104, %s105, %s106
      %p110 = pneg %p104
      %p111 = scmp.eq.s32.totalorder %s14, 1
      %p112 = por %p110, %p111
      %p113 = scmp.ne.s32.totalorder %s105, %s108
      %p114 = scmp.eq.s32.totalorder %s14, 0
      %p115 = por %p113, %p114
      %p116 = scmp.ne.s32.totalorder %s105, %s108
      %p117 = scmp.eq.s32.totalorder %s19, 1
      %p118 = por %p116, %p117
      %p119 = scmp.ne.s32.totalorder %s108, %s109
      %p120 = scmp.eq.s32.totalorder %s19, 0
      %p121 = por %p119, %p120
      %p122 = scmp.ne.s32.totalorder %s108, %s109
      %p123 = scmp.eq.s32.totalorder %s20, 1
      %p124 = por %p122, %p123
      %p126 = scmp.ne.s32.totalorder %s109, %s125
      %p127 = scmp.eq.s32.totalorder %s20, 0
      %p128 = por %p126, %p127
      %p129 = scmp.le.s32.totalorder 1, %s14
      %p130 = scmp.lt.s32.totalorder %s14, 3
      %p131 = pnand %p129, %p130
      %p132 = pneg %p131
      // Predicated region
      $region9: #{tpu_custom_call.1} parent=5 // pred_check
        _
      $region10: #{tpu_custom_call.1} parent=5 // pred_check_branch
        %134 = sbr.rel (%p131) target = $region12
      $region11: #{tpu_custom_call.1} parent=5 // pred_region
        %s135 = ssub.s32 %s14, 1
      $region12: #{tpu_custom_call.1} parent=5 // pred_fallthru
        _
      %p136 = scmp.lt.s32.totalorder %s14, 2
      // Predicated region
      $region13: #{tpu_custom_call.1} parent=5 // pred_check
        %p137 = pneg %p136
      $region14: #{tpu_custom_call.1} parent=5 // pred_check_branch
        %139 = sbr.rel (%p137) target = $region16
      $region15: #{tpu_custom_call.1} parent=5 // pred_region
        // Predicated region
        $region17: #{tpu_custom_call.1} parent=15 // pred_check
          %p140 = pneg %p57
        $region18: #{tpu_custom_call.1} parent=15 // pred_check_branch
          %142 = sbr.rel (%p140) target = $region20
        $region19: #{tpu_custom_call.1} parent=15 // pred_region
          %s143 = sand.u32 %s47, 1
          %s144 = scalar_lea.sflag [#allocation3], %s143
          %s145 = sand.u32 %s47, 1
          %s146 = smul.addr %s145, 8
          %s147 = scalar_lea.vmem [#allocation2], %s146
          %s148 = sadd.s32 %s22, %s23
          %s149 = smul.u32 2, %s148
          %s151 = ssub.s32 128, 128
          %152 = vsyncadd %s144, %s151
          %s153 = smul.addr %s21, 2
          %s154 = sadd.s32 %s149, %s153
          %s155 = smul.addr %s154, 64
          %s156 = scalar_lea.hbm %s0, %s155
          %s158 = sshll.u32 %s147, 4
          %s159 = int_to_ptr.vmem [resolvable:$true] %s158
          %161 = dma.hbm_to_vmem [thread:$0]  %s156, 128, %s159, %s144
        $region20: #{tpu_custom_call.1} parent=15 // pred_fallthru
          _
        // Predicated region
        $region21: #{tpu_custom_call.1} parent=15 // pred_check
          %p162 = pneg %p87
        $region22: #{tpu_custom_call.1} parent=15 // pred_check_branch
          %164 = sbr.rel (%p162) target = $region24
        $region23: #{tpu_custom_call.1} parent=15 // pred_region
          %s165 = sand.u32 %s77, 1
          %s166 = scalar_lea.sflag [#allocation5], %s165
          %s167 = sand.u32 %s77, 1
          %s168 = smul.addr %s167, 2
          %s169 = scalar_lea.vmem [#allocation4], %s168
          %s170 = sadd.s32 %s22, %s23
          %s171 = smul.u32 2, %s170
          %s173 = ssub.s32 32, 32
          %174 = vsyncadd %s166, %s173
          %s175 = smul.addr %s21, 2
          %s176 = sadd.s32 %s171, %s175
          %s177 = smul.addr %s176, 16
          %s178 = scalar_lea.hbm %s1, %s177
          %s180 = sshll.u32 %s169, 4
          %s181 = int_to_ptr.vmem [resolvable:$true] %s180
          %183 = dma.hbm_to_vmem [thread:$0]  %s178, 32, %s181, %s166
        $region24: #{tpu_custom_call.1} parent=15 // pred_fallthru
          _
      $region16: #{tpu_custom_call.1} parent=5 // pred_fallthru
        _
      %p184 = scmp.le.s32.totalorder 1, %s14
      %p185 = scmp.lt.s32.totalorder %s14, 3
      %p186 = pnand %p184, %p185
      %p187 = pneg %p186
      // Predicated region
      $region25: #{tpu_custom_call.1} parent=5 // pred_check
        _
      $region26: #{tpu_custom_call.1} parent=5 // pred_check_branch
        %189 = sbr.rel (%p186) target = $region28
      $region27: #{tpu_custom_call.1} parent=5 // pred_region
        %s190 = ssub.s32 %s14, 1
        %s191 = sand.u32 %s50, 1
        %s192 = scalar_lea.sflag [#allocation3], %s191
        %s193 = sand.u32 %s50, 1
        %s194 = smul.addr %s193, 8
        %s195 = scalar_lea.vmem [#allocation2], %s194
        // Predicated region
        $region29: #{tpu_custom_call.1} parent=27 // pred_check
          %p196 = pneg %p63
        $region30: #{tpu_custom_call.1} parent=27 // pred_check_branch
          %198 = sbr.rel (%p196) target = $region32
        $region31: #{tpu_custom_call.1} parent=27 // pred_region
          %199 = dma.done %s192, 128
        $region32: #{tpu_custom_call.1} parent=27 // pred_fallthru
          _
        %s200 = sand.u32 %s80, 1
        %s201 = scalar_lea.sflag [#allocation5], %s200
        %s202 = sand.u32 %s80, 1
        %s203 = smul.addr %s202, 2
        %s204 = scalar_lea.vmem [#allocation4], %s203
        // Predicated region
        $region33: #{tpu_custom_call.1} parent=27 // pred_check
          %p205 = pneg %p93
        $region34: #{tpu_custom_call.1} parent=27 // pred_check_branch
          %207 = sbr.rel (%p205) target = $region36
        $region35: #{tpu_custom_call.1} parent=27 // pred_region
          %208 = dma.done %s201, 32
        $region36: #{tpu_custom_call.1} parent=27 // pred_fallthru
          _
        %s209 = sand.u32 %s50, 1
        %s210 = scalar_lea.sflag [#allocation3], %s209
        %s211 = sand.u32 %s50, 1
        %s212 = smul.addr %s211, 8
        %s213 = scalar_lea.vmem [#allocation2], %s212
        %p214 = pneg %p63
        %p215 = pneg %p60
        %s216 = sand.u32 %s80, 1
        %s217 = scalar_lea.sflag [#allocation5], %s216
        %s218 = sand.u32 %s80, 1
        %s219 = smul.addr %s218, 2
        %s220 = scalar_lea.vmem [#allocation4], %s219
        %p221 = pneg %p93
        %p222 = pneg %p90
        %p223 = pneg %p121
        %p224 = pneg %p118
        %p225 = scmp.lt.s32.totalorder %s24, 1
        %s226 = scalar_select %p225, %s24, 1
        %p227 = scmp.lt.s32.totalorder %s25, 0
        %s228 = scalar_select %p227, %s25, 0
        %s229 = sadd.s32 %s228, %s226
        %s230 = smul.addr %s229, 4
        %s231 = scalar_lea.vmem %s2, %s230
        %s232 = sadd.s32 %s25, %s26
        %s233 = smul.u32 2, %s232
        %s234 = sadd.s32 %s25, %s26
        %s235 = smul.u32 2, %s234
        %p236 = scmp.lt.s32.totalorder %s24, 1
        %s237 = scalar_select %p236, %s24, 1
        %p238 = scmp.lt.s32.totalorder %s25, 0
        %s239 = scalar_select %p238, %s25, 0
        %s240 = sadd.s32 %s239, %s237
        %s241 = smul.addr %s240, 4
        %s242 = scalar_lea.vmem %s2, %s241
        %p243 = scmp.eq.s32.totalorder %s26, 0
        // Predicated region
        $region37: #{tpu_custom_call.1} parent=27 // pred_check
          %p244 = pneg %p243
        $region38: #{tpu_custom_call.1} parent=27 // pred_check_branch
          %246 = sbr.rel (%p244) target = $region40
        $region39: #{tpu_custom_call.1} parent=27 // pred_region
          %vm247 = vcmask 19456
          %248 = vst.msk [vmem:[%s242] sm:$0xf] %vm247, 0.0
        $region40: #{tpu_custom_call.1} parent=27 // pred_fallthru
          _
        %v249 = vld [vmem:[%s195] sm:$0xff]
        %v250 = vld [vmem:[%s204] sm:$0x3]
        %v252 = vcombine.high %v249, %v249
        %vm254 = vcmask 1043456
        %v255 = vsel %vm254, %v249, -inf
        %v256 = vrot.slane %v255, 4
        %v257 = vmax.f32 %v255, %v256
        %v258 = vrot.slane %v257, 2
        %v259 = vmax.f32 %v257, %v258
        %v260 = vrot.slane %v259, 1
        %v261 = vmax.f32 %v259, %v260
        %v262 = vsel %vm254, %v252, -inf
        %v263 = vrot.slane %v262, 4
        %v264 = vmax.f32 %v262, %v263
        %v265 = vrot.slane %v264, 2
        %v266 = vmax.f32 %v264, %v265
        %v267 = vrot.slane %v266, 1
        %v268 = vmax.f32 %v266, %v267
        %v271 = vcombine.low %v261, %v268
        %v273 = vsub.f32 %v249, %v271
        %v274 = vmul.f32 %v273, 1.442695
        %v275 = vpow.pop %v274
        %v277 = vcombine.high %v275, %v275
        %v279 = vsel %vm254, %v275, 0.0
        %v280 = vrot.slane %v279, 4
        %v281 = vadd.f32 %v279, %v280
        %v282 = vrot.slane %v281, 2
        %v283 = vadd.f32 %v281, %v282
        %v284 = vrot.slane %v283, 1
        %v285 = vadd.f32 %v283, %v284
        %v286 = vsel %vm254, %v277, 0.0
        %v287 = vrot.slane %v286, 4
        %v288 = vadd.f32 %v286, %v287
        %v289 = vrot.slane %v288, 2
        %v290 = vadd.f32 %v288, %v289
        %v291 = vrot.slane %v290, 1
        %v292 = vadd.f32 %v290, %v291
        %v293 = vrcp.pop %v285
        %v294 = vrcp.pop %v292
        %v295 = vmul.f32 %v285, %v293
        %v296 = vmul.f32 %v292, %v294
        %v297 = vsub.f32 2.0, %v295
        %v298 = vsub.f32 2.0, %v296
        %v299 = vmul.f32 %v293, %v297
        %v300 = vmul.f32 %v294, %v298
        %v303 = vcombine.low %v299, %v300
        %v305 = vmul.f32 %v275, %v303
        %v306 = vlaneseq
        %v307 = vshrl.u32 %v306, 7
        %v308 = vlaneseq
        %v309 = vshrl.u32 %v308, 7
        %v310 = vsub.s32 0, %v309
        %v311 = vrot.slane %v250, %v310
        %v312 = vlaneseq
        %v313 = vshrl.u32 %v312, 7
        %v314 = vsub.s32 1, %v313
        %v315 = vrot.slane %v250, %v314
        %vm316 = vcmp.eq.s32.totalorder %v311, %v307
        %vm317 = vcmp.eq.s32.totalorder %v315, %v307
        %v318 = vsel %vm316, 1, 0
        %v319 = vsel %vm317, 1, 0
        %v320 = vcvt.s32.f32 %v318
        %v321 = vcvt.s32.f32 %v319
        %v324 = vcombine.low %v320, %v321
        %v326 = vmul.f32 %v305, %v324
        %v328 = vcombine.high %v326, %v326
        %v330 = vsel %vm254, %v326, 0.0
        %v331 = vsel %vm254, %v328, 0.0
        %v332 = vadd.f32 %v330, %v331
        %333 = vadd.xlane.f32.xlu0 %v332
        %v334 = vpop.xlane.xlu0 %333
        %v335 = vmul.f32 %v305, %v305
        %v337 = vcombine.high %v335, %v335
        %v339 = vsel %vm254, %v335, 0.0
        %v340 = vsel %vm254, %v337, 0.0
        %v341 = vadd.f32 %v339, %v340
        %342 = vadd.xlane.f32.xlu0 %v341
        %v343 = vpop.xlane.xlu0 %342
        %v344 = vsel %vm254, %v320, 0.0
        %v345 = vsel %vm254, %v321, 0.0
        %v346 = vadd.f32 %v344, %v345
        %347 = vadd.xlane.f32.xlu0 %v346
        %v348 = vpop.xlane.xlu0 %347
        %v349 = vlaneseq
        %v350 = vand.u32 %v349, 127
        %vm351 = vcmp.eq.s32.totalorder %v350, 0
        %vm352 = vcmp.eq.s32.totalorder %v350, 1
        %v353 = vsel %vm352, %v343, %v348
        %v354 = vsel %vm351, %v334, %v353
        %v355 = vld [vmem:[%s242] sm:$0xf]
        %v356 = vadd.f32 %v355, %v354
        %vm357 = vcmask 19456
        %358 = vst.msk [vmem:[%s242] sm:$0xf] %vm357, %v356
        %p359 = scmp.lt.s32.totalorder %s24, 1
        %s360 = scalar_select %p359, %s24, 1
        %p361 = scmp.lt.s32.totalorder %s25, 0
        %s362 = scalar_select %p361, %s25, 0
        %s363 = sadd.s32 %s362, %s360
        %s364 = smul.addr %s363, 4
        %s365 = scalar_lea.vmem %s2, %s364
        // Predicated region
        $region41: #{tpu_custom_call.1} parent=27 // pred_check
          %p366 = pneg %p118
        $region42: #{tpu_custom_call.1} parent=27 // pred_check_branch
          %368 = sbr.rel (%p366) target = $region44
        $region43: #{tpu_custom_call.1} parent=27 // pred_region
          _
        $region44: #{tpu_custom_call.1} parent=27 // pred_fallthru
          _
      $region28: #{tpu_custom_call.1} parent=5 // pred_fallthru
        _
      %p369 = scmp.le.s32.totalorder 2, %s14
      // Predicated region
      $region45: #{tpu_custom_call.1} parent=5 // pred_check
        %p370 = pneg %p369
      $region46: #{tpu_custom_call.1} parent=5 // pred_check_branch
        %372 = sbr.rel (%p370) target = $region48
      $region47: #{tpu_custom_call.1} parent=5 // pred_region
        %s373 = ssub.s32 %s14, 2
        // Predicated region
        $region49: #{tpu_custom_call.1} parent=47 // pred_check
          %p374 = pneg %p124
        $region50: #{tpu_custom_call.1} parent=47 // pred_check_branch
          %376 = sbr.rel (%p374) target = $region52
        $region51: #{tpu_custom_call.1} parent=47 // pred_region
          %p377 = scmp.lt.s32.totalorder %s27, 1
          %s378 = scalar_select %p377, %s27, 1
          %p379 = scmp.lt.s32.totalorder %s28, 0
          %s380 = scalar_select %p379, %s28, 0
          %s381 = sadd.s32 %s380, %s378
          %s382 = smul.addr %s381, 4
          %s383 = scalar_lea.vmem %s2, %s382
        $region52: #{tpu_custom_call.1} parent=47 // pred_fallthru
          _
      $region48: #{tpu_custom_call.1} parent=5 // pred_fallthru
        _
    $region6: #{tpu_custom_call.1} parent=1 // loop_footer
      %s18 = sadd.s32 1, %s14
    $region7: #{tpu_custom_call.1} parent=1 // loop_footer_branch
      %13 = sbr.rel target = $region3
    $region8: #{tpu_custom_call.1} parent=1 // loop_exit
      _
    %384 = vsyncpa [#allocation3], 1
    %s385 = scalar_lea.sflag [#allocation3], 1
    %386 = vsyncpa %s385, 1
    %387 = vsyncpa [#allocation5], 1
    %s388 = scalar_lea.sflag [#allocation5], 1
    %389 = vsyncpa %s388, 1

</llo_original>
